<compile_context>
chip_gen: v6e
topology: v6e:2x2x1
jax: 0.10.0
libtpu: 0.0.40
codegen_flags: <defaults>
</compile_context>

<pallas_src>
from typing import Dict, List, NamedTuple, Optional, Tuple

import jax
import jax.numpy as jnp
from jax.experimental import pallas as pl
from jax.experimental.pallas import tpu as pltpu

LANE = 128


def _round_up(x: int, m: int) -> int:
    return ((x + m - 1) // m) * m


def _vmem_budget_bytes() -> int:
    """Per-generation VMEM budget for the double-buffered working set."""
    try:
        cap = int(pltpu.get_tpu_info().vmem_capacity_bytes)
    except Exception:  # pragma: no cover - conservative fallback
        cap = 128 * 1024 * 1024
    # Stay well below v7x's 64 MiB physical VMEM; v5e/v6e have 128 MiB.
    return min(int(cap * 0.70), 44 * 1024 * 1024)


# ----------------------------------------------------------------------------
# Kernels
# ----------------------------------------------------------------------------
def _mm_bias_kernel(x_ref, w_ref, b_ref, o_ref):
    """Single-K-step fast path: one (tm, tn) tile = dot + bias, no scratch."""
    o_ref[...] = (
        jnp.dot(x_ref[...], w_ref[...], preferred_element_type=jnp.float32)
        + b_ref[...]
    ).astype(o_ref.dtype)


def _mm_bias_acc_kernel(x_ref, w_ref, b_ref, o_ref, acc_ref):
    """General path: K grid axis with an f32 accumulator; bias folded into init."""
    k = pl.program_id(2)

    @pl.when(k == 0)
    def _():
        acc_ref[...] = jnp.broadcast_to(b_ref[...], acc_ref.shape).astype(jnp.float32)

    acc_ref[...] += jnp.dot(
        x_ref[...], w_ref[...], preferred_element_type=jnp.float32
    )

    @pl.when(k == pl.num_programs(2) - 1)
    def _():
        o_ref[...] = acc_ref[...].astype(o_ref.dtype)


# ----------------------------------------------------------------------------
# One-time parameter preparation (hoisted out of the per-call path)
# ----------------------------------------------------------------------------
class MultiheadParams(NamedTuple):
    w_pad: jax.Array               # (k_pad, n_pad), zero-padded
    b_pad: jax.Array               # (1, n_pad), float32, zero-padded
    head_offsets: Tuple[int, ...]  # column offset of each head in the fused output
    head_dims: Tuple[int, ...]     # true (unpadded) width of each head
    in_features: int
    tk: int
    tn: int
    k_pad: int
    n_pad: int


def prepare_multihead_params(
    weights: Dict[str, jax.Array],   # each (in_features, dims[k])
    biases: Dict[str, jax.Array],    # each (dims[k],)
    names: List[str],
    *,
    mxu_dtype: Optional[jnp.dtype] = None,  # e.g. jnp.bfloat16 for MXU peak
    max_tile_k: Optional[int] = None,
    max_tile_n: Optional[int] = None,
) -> MultiheadParams:
    """Concatenate / pad head parameters once.  Call at init time, not per step."""
    in_features = int(weights[names[0]].shape[0])
    dims = [int(weights[k].shape[1]) for k in names]

    compute_dtype = jnp.dtype(mxu_dtype) if mxu_dtype is not None else jnp.dtype(
        weights[names[0]].dtype
    )
    item = compute_dtype.itemsize

    # Lane-align each head's start (pad each head's width to a multiple of 128)
    # so the post-kernel per-head slices start on lane boundaries -- unless the
    # heads are so tiny that this would more than double streamed weight bytes.
    aligned_total = sum(_round_up(d, LANE) for d in dims)
    plain_total = _round_up(sum(dims), LANE)
    lane_align_heads = aligned_total <= 2 * plain_total
    padded_widths = [_round_up(d, LANE) if lane_align_heads else d for d in dims]

    offsets, off = [], 0
    for pw in padded_widths:
        offsets.append(off)
        off += pw
    n_total = off
    n_lane = _round_up(n_total, LANE)

    # --- tile-size selection (K/N known now; M is chosen per call) ----------
    tk_cap = 2048 if item < 4 else 1024
    tn_cap = 1024
    if max_tile_k is not None:
        tk_cap = min(tk_cap, _round_up(max_tile_k, LANE))
    if max_tile_n is not None:
        tn_cap = min(tn_cap, _round_up(max_tile_n, LANE))

    tk = min(_round_up(in_features, LANE), tk_cap)
    tn = min(n_lane, tn_cap)

    # Fit the (worst-case tm = 256) double-buffered working set in the budget.
    tm_worst = 256
    budget = _vmem_budget_bytes()

    def need(tk_, tn_):
        return (
            2 * (tm_worst * tk_ + tk_ * tn_) * item  # x / w tiles, double-buffered
            + 2 * tn_ * 4                            # bias tile (f32)
            + 2 * tm_worst * tn_ * 4                 # output tile
            + tm_worst * tn_ * 4                     # f32 accumulator (worst case)
        )

    while need(tk, tn) > budget:
        if tn > LANE:
            tn = max(LANE, (tn // 2) // LANE * LANE)
        elif tk > LANE:
            tk = max(LANE, (tk // 2) // LANE * LANE)
        else:
            break

    # Guarantee >=2 N tiles when possible so both TensorCores are used on v7x
    # (grid axes are marked "parallel"); ~0.35 us/step extra on 1-TC chips.
    if tn >= n_lane and n_lane >= 2 * LANE:
        tn = max(LANE, (n_lane // 2) // LANE * LANE)

    k_pad = _round_up(in_features, tk)
    n_pad = _round_up(n_total, tn)

    # --- build padded, fused weight / bias (one-time HBM passes) ------------
    w_blocks, b_blocks = [], []
    for name, d, pw in zip(names, dims, padded_widths):
        w = weights[name].astype(compute_dtype)
        b = biases[name].astype(jnp.float32)
        if pw > d:
            w = jnp.pad(w, ((0, 0), (0, pw - d)))
            b = jnp.pad(b, (0, pw - d))
        w_blocks.append(w)
        b_blocks.append(b)
    w_cat = jnp.concatenate(w_blocks, axis=1)
    b_cat = jnp.concatenate(b_blocks, axis=0)

    w_pad = jnp.pad(w_cat, ((0, k_pad - in_features), (0, n_pad - n_total)))
    b_pad = jnp.pad(b_cat, (0, n_pad - n_total)).reshape(1, n_pad)

    return MultiheadParams(
        w_pad=w_pad,
        b_pad=b_pad,
        head_offsets=tuple(offsets),
        head_dims=tuple(dims),
        in_features=in_features,
        tk=tk,
        tn=tn,
        k_pad=k_pad,
        n_pad=n_pad,
    )


# ----------------------------------------------------------------------------
# Per-call forward
# ----------------------------------------------------------------------------
def multihead_forward(x: jax.Array, params: MultiheadParams) -> List[jax.Array]:
    """Pallas implementation of _HelperNet.forward for Linear heads."""
    batch, in_features = x.shape
    if in_features != params.in_features:
        raise ValueError("in_features mismatch with prepared params")

    out_dtype = x.dtype
    compute_dtype = params.w_pad.dtype
    item = jnp.dtype(compute_dtype).itemsize
    sublane = 8 if item >= 4 else 32 // item  # f32 -> 8, bf16 -> 16

    tk, tn, k_pad, n_pad = params.tk, params.tn, params.k_pad, params.n_pad
    tm = min(_round_up(batch, sublane), 256)
    m_pad = _round_up(batch, tm)

    x_p = x.astype(compute_dtype)
    if m_pad != batch or k_pad != in_features:
        x_p = jnp.pad(x_p, ((0, m_pad - batch), (0, k_pad - in_features)))

    grid_m, grid_n, grid_k = m_pad // tm, n_pad // tn, k_pad // tk

    out_item = jnp.dtype(out_dtype).itemsize
    need = (
        2 * (tm * tk + tk * tn) * item
        + 2 * tn * 4
        + 2 * tm * tn * out_item
        + (tm * tn * 4 if grid_k > 1 else 0)
    )
    vmem_limit = int(min(max(2 * need, 16 * 1024 * 1024), _vmem_budget_bytes()))
    vmem_limit = int(max(vmem_limit, need + (1 << 20)))  # always >= working set

    if grid_k == 1:
        # Fast path: whole K in one tile -> no accumulator, no init/finalize.
        out_cat = pl.pallas_call(
            _mm_bias_kernel,
            out_shape=jax.ShapeDtypeStruct((m_pad, n_pad), out_dtype),
            grid_spec=pltpu.PrefetchScalarGridSpec(
                num_scalar_prefetch=0,
                grid=(grid_m, grid_n),
                in_specs=[
                    pl.BlockSpec((tm, tk), lambda i, j: (i, 0)),
                    pl.BlockSpec((tk, tn), lambda i, j: (0, j)),
                    pl.BlockSpec((1, tn), lambda i, j: (0, j)),
                ],
                out_specs=pl.BlockSpec((tm, tn), lambda i, j: (i, j)),
            ),
            compiler_params=pltpu.CompilerParams(
                dimension_semantics=("parallel", "parallel"),
                vmem_limit_bytes=vmem_limit,
            ),
        )(x_p, params.w_pad, params.b_pad)
    else:
        out_cat = pl.pallas_call(
            _mm_bias_acc_kernel,
            out_shape=jax.ShapeDtypeStruct((m_pad, n_pad), out_dtype),
            grid_spec=pltpu.PrefetchScalarGridSpec(
                num_scalar_prefetch=0,
                grid=(grid_m, grid_n, grid_k),
                in_specs=[
                    pl.BlockSpec((tm, tk), lambda i, j, k: (i, k)),
                    pl.BlockSpec((tk, tn), lambda i, j, k: (k, j)),
                    pl.BlockSpec((1, tn), lambda i, j, k: (0, j)),
                ],
                out_specs=pl.BlockSpec((tm, tn), lambda i, j, k: (i, j)),
                scratch_shapes=[pltpu.VMEM((tm, tn), jnp.float32)],
            ),
            compiler_params=pltpu.CompilerParams(
                dimension_semantics=("parallel", "parallel", "arbitrary"),
                vmem_limit_bytes=vmem_limit,
            ),
        )(x_p, params.w_pad, params.b_pad)

    # Split back into the per-head list (names order), mirroring
    # [self.networks[k](tensor) for k in self.names].  Offsets are lane-aligned
    # when the heads are large enough, so these slices are cheap.
    outs = []
    for off, d in zip(params.head_offsets, params.head_dims):
        outs.append(out_cat[:batch, off:off + d])
    return outs


# ----------------------------------------------------------------------------
# Demo / correctness check
# ----------------------------------------------------------------------------
def _make_case(key, batch, in_features, dims_dict):
    names = list(dims_dict.keys())
    kx, kp = jax.random.split(key)
    x = jax.random.normal(kx, (batch, in_features), dtype=jnp.float32)
    bound = 1.0 / (in_features ** 0.5)  # torch.nn.Linear default init scale
    weights, biases = {}, {}
    for i, name in enumerate(names):
        kw, kb = jax.random.split(jax.random.fold_in(kp, i))
        weights[name] = jax.random.uniform(
            kw, (in_features, dims_dict[name]), jnp.float32, -bound, bound
        )
        biases[name] = jax.random.uniform(
            kb, (dims_dict[name],), jnp.float32, -bound, bound
        )
    return x, weights, biases, names


def _check_case(x, weights, biases, names, outs):
    for name, o in zip(names, outs):
        ref = x @ weights[name] + biases[name]
        assert o.shape == ref.shape, f"shape mismatch in {name}"
        assert jnp.allclose(o, ref, atol=1e-4, rtol=1e-4), f"mismatch in {name}"


if __name__ == "__main__":
    key = jax.random.PRNGKey(0)
    k1, k2, k3 = jax.random.split(key, 3)

    # Case 1: tiny heads -> plain (non-lane-aligned) concat, single-block fast path.
    x1, w1, b1, n1 = _make_case(k1, batch=8, in_features=32,
                                dims_dict={"head_a": 16, "head_b": 24, "head_c": 8})
    p1 = prepare_multihead_params(w1, b1, n1)   # one-time; hoisted out of the call
    o1 = jax.block_until_ready(multihead_forward(x1, p1))
    _check_case(x1, w1, b1, n1, o1)

    # Case 2: larger heads -> lane-aligned per-head offsets, >=2 "parallel" N tiles.
    x2, w2, b2, n2 = _make_case(k2, batch=32, in_features=160,
                                dims_dict={"u": 128, "v": 192, "w": 64})
    p2 = prepare_multihead_params(w2, b2, n2)
    o2 = jax.block_until_ready(multihead_forward(x2, p2))
    _check_case(x2, w2, b2, n2, o2)

    # Case 3: force a small K tile to exercise the multi-K accumulator path.
    x3, w3, b3, n3 = _make_case(k3, batch=16, in_features=256,
                                dims_dict={"p": 8, "q": 8})
    p3 = prepare_multihead_params(w3, b3, n3, max_tile_k=128)
    o3 = jax.block_until_ready(multihead_forward(x3, p3))
    _check_case(x3, w3, b3, n3, o3)

    print("KERNEL_OK")
</pallas_src>

<mosaic_0001>
module attributes {stable_mosaic.version = 11 : i64} {
  func.func @_mm_bias_kernel(%arg0: i32, %arg1: i32, %arg2: memref<8x128xf32, #tpu.memory_space<vmem>>, %arg3: memref<128x128xf32, #tpu.memory_space<vmem>>, %arg4: memref<1x128xf32, #tpu.memory_space<vmem>>, %arg5: memref<8x128xf32, #tpu.memory_space<vmem>>) attributes {dimension_semantics = [#tpu.dimension_semantics<parallel>, #tpu.dimension_semantics<parallel>], iteration_bounds = array<i64: 1, 1>, scalar_prefetch = 0 : i64, scratch_operands = 0 : i64, tpu.core_type = #tpu.core_type<tc>, window_params = [{transform_indices = @transform_0, window_bounds = array<i64: 8, 128>}, {transform_indices = @transform_1, window_bounds = array<i64: 128, 128>}, {transform_indices = @transform_2, window_bounds = array<i64: 1, 128>}, {transform_indices = @transform_3, window_bounds = array<i64: 8, 128>}]} {
    %c0 = arith.constant 0 : index
    %c0_0 = arith.constant 0 : index
    %0 = vector.load %arg2[%c0, %c0_0] : memref<8x128xf32, #tpu.memory_space<vmem>>, vector<8x128xf32>
    %c0_1 = arith.constant 0 : index
    %c0_2 = arith.constant 0 : index
    %1 = vector.load %arg3[%c0_1, %c0_2] : memref<128x128xf32, #tpu.memory_space<vmem>>, vector<128x128xf32>
    %cst = arith.constant dense<0.000000e+00> : vector<8x128xf32>
    %2 = tpu.matmul %0, %1, %cst {dimension_numbers = #tpu.dot_dimension_numbers<[1], [0], [0], [1], [0, 0, 1, 1], [], []>} : vector<8x128xf32>, vector<128x128xf32>, vector<8x128xf32> -> vector<8x128xf32>
    %c0_3 = arith.constant 0 : index
    %c0_4 = arith.constant 0 : index
    %3 = vector.load %arg4[%c0_3, %c0_4] : memref<1x128xf32, #tpu.memory_space<vmem>>, vector<1x128xf32>
    %4 = vector.broadcast %3 : vector<1x128xf32> to vector<8x128xf32>
    %5 = arith.addf %2, %4 : vector<8x128xf32>
    %c0_5 = arith.constant 0 : index
    %c0_6 = arith.constant 0 : index
    %6 = vector.load %arg5[%c0_5, %c0_6] : memref<8x128xf32, #tpu.memory_space<vmem>>, vector<8x128xf32>
    tpu.vector_store %arg5[%c0_5, %c0_6], %5 {strides = array<i32>} : memref<8x128xf32, #tpu.memory_space<vmem>>, vector<8x128xf32>,
    return
  }
  func.func @transform_0(%arg0: i32, %arg1: i32) -> (i32, i32) {
    %c0_i32 = arith.constant 0 : i32
    %c0_i32_0 = arith.constant 0 : i32
    return %arg0, %c0_i32 : i32, i32
  }
  func.func @transform_1(%arg0: i32, %arg1: i32) -> (i32, i32) {
    %c0_i32 = arith.constant 0 : i32
    %c0_i32_0 = arith.constant 0 : i32
    return %c0_i32, %arg1 : i32, i32
  }
  func.func @transform_2(%arg0: i32, %arg1: i32) -> (i32, i32) {
    %c0_i32 = arith.constant 0 : i32
    %c0_i32_0 = arith.constant 0 : i32
    return %c0_i32, %arg1 : i32, i32
  }
  func.func @transform_3(%arg0: i32, %arg1: i32) -> (i32, i32) {
    %c0_i32 = arith.constant 0 : i32
    return %arg0, %arg1 : i32, i32
  }
}

</mosaic_0001>

<llo_original>
// kernel: tpu_custom_call.1
$region0: #{tpu_custom_call.1}
  #allocation0 [shape = 'u32[]', space=smem, size = 0x4, offset = 0x4, fixed_abs, tag = 'smem constant byte address 0x4 - core index']
  #allocation1 [shape = 'u32[144,128]{1,0:T(1,128)}', space=vmem, size = 0x12000, scoped, tag = 'internal scratch']
  %s0 = inlined_call_operand.hbm [shape: f32[8,128], index: 0, kind: input, shape index: {}]
  %s1 = inlined_call_operand.hbm [shape: f32[128,128], index: 1, kind: input, shape index: {}]
  %s2 = inlined_call_operand.vmem [shape: f32[1,128], index: 2, kind: input, shape index: {}]
  %s3 = inlined_call_operand.hbm [shape: f32[8,128], index: 3, kind: output, shape index: {}]
  %s4 = sld [smem:[#allocation0]]
  $region30: #{tpu_custom_call.1} parent=0
    _
  %s6 = ssub.s32 1, %s4
  %s7 = scalar_select 0, %s6, %s4
  $region1: #{tpu_custom_call.1} parent=0
    #allocation2 [shape = 'u8[4096]{0}', space=vmem, size = 0x1000, scoped, tag = 'input window, operand 0, single buffered']
    #allocation3 [shape = 's32[1]{0}', space=sflag, size = 0x4, scoped, tag = 'scoped memory for tpu_custom_call.1']
    #allocation4 [shape = 's32[1]{0}', space=sflag, size = 0x4, scoped, tag = 'scoped memory for tpu_custom_call.1']
    #allocation5 [shape = 'u8[65536]{0}', space=vmem, size = 0x10000, scoped, tag = 'input window, operand 1, single buffered']
    #allocation6 [shape = 's32[1]{0}', space=sflag, size = 0x4, scoped, tag = 'scoped memory for tpu_custom_call.1']
    #allocation7 [shape = 'u8[4096]{0}', space=vmem, size = 0x1000, scoped, tag = 'output window, operand 0, single buffered']
    %8 = vsyncpa [#allocation3], 0
    %9 = vsyncpa [#allocation6], 0
    %10 = vsyncpa [#allocation4], 0
    // Predicated region
    $region2: #{tpu_custom_call.1} parent=1 // pred_check
      _
    $region3: #{tpu_custom_call.1} parent=1 // pred_check_branch
      %12 = sbr.rel (0) target = $region5
    $region4: #{tpu_custom_call.1} parent=1 // pred_region
      %s14 = ssub.s32 128, 128
      %15 = vsyncadd [#allocation3], %s14
      %s17 = sshll.u32 [#allocation2], 4
      %s18 = int_to_ptr.vmem [resolvable:$true] %s17
      %20 = dma.hbm_to_vmem [thread:$0]  %s0, 128, %s18, [#allocation3]
    $region5: #{tpu_custom_call.1} parent=1 // pred_fallthru
      _
    // Predicated region
    $region6: #{tpu_custom_call.1} parent=1 // pred_check
      _
    $region7: #{tpu_custom_call.1} parent=1 // pred_check_branch
      %22 = sbr.rel (0) target = $region9
    $region8: #{tpu_custom_call.1} parent=1 // pred_region
      %s24 = ssub.s32 2048, 2048
      %25 = vsyncadd [#allocation6], %s24
      %s26 = sshll.u32 [#allocation5], 4
      %s27 = int_to_ptr.vmem [resolvable:$true] %s26
      %32 = dma.hbm_to_vmem [thread:$0]  %s1, 2048, %s27, [#allocation6], 128, 128, 8
    $region9: #{tpu_custom_call.1} parent=1 // pred_fallthru
      _
    // Predicated region
    $region10: #{tpu_custom_call.1} parent=1 // pred_check
      _
    $region11: #{tpu_custom_call.1} parent=1 // pred_check_branch
      %34 = sbr.rel (0) target = $region13
    $region12: #{tpu_custom_call.1} parent=1 // pred_region
      _
    $region13: #{tpu_custom_call.1} parent=1 // pred_fallthru
      _
    // Predicated region
    $region14: #{tpu_custom_call.1} parent=1 // pred_check
      _
    $region15: #{tpu_custom_call.1} parent=1 // pred_check_branch
      %36 = sbr.rel (0) target = $region17
    $region16: #{tpu_custom_call.1} parent=1 // pred_region
      %37 = dma.done [#allocation3], 128
    $region17: #{tpu_custom_call.1} parent=1 // pred_fallthru
      _
    // Predicated region
    $region18: #{tpu_custom_call.1} parent=1 // pred_check
      _
    $region19: #{tpu_custom_call.1} parent=1 // pred_check_branch
      %39 = sbr.rel (0) target = $region21
    $region20: #{tpu_custom_call.1} parent=1 // pred_region
      %40 = dma.done [#allocation6], 2048
    $region21: #{tpu_custom_call.1} parent=1 // pred_fallthru
      _
    %v41 = vld [vmem:[#allocation2] sm:$0xff]
    %v42 = vld [vmem:[#allocation5] sm:$0xff]
    %v43 = vld [vmem:[#allocation5 + $0x8] sm:$0xff]
    %v44 = vld [vmem:[#allocation5 + $0x10] sm:$0xff]
    %v45 = vld [vmem:[#allocation5 + $0x18] sm:$0xff]
    %v46 = vld [vmem:[#allocation5 + $0x20] sm:$0xff]
    %v47 = vld [vmem:[#allocation5 + $0x28] sm:$0xff]
    %v48 = vld [vmem:[#allocation5 + $0x30] sm:$0xff]
    %v49 = vld [vmem:[#allocation5 + $0x38] sm:$0xff]
    %v50 = vld [vmem:[#allocation5 + $0x40] sm:$0xff]
    %v51 = vld [vmem:[#allocation5 + $0x48] sm:$0xff]
    %v52 = vld [vmem:[#allocation5 + $0x50] sm:$0xff]
    %v53 = vld [vmem:[#allocation5 + $0x58] sm:$0xff]
    %v54 = vld [vmem:[#allocation5 + $0x60] sm:$0xff]
    %v55 = vld [vmem:[#allocation5 + $0x68] sm:$0xff]
    %v56 = vld [vmem:[#allocation5 + $0x70] sm:$0xff]
    %v57 = vld [vmem:[#allocation5 + $0x78] sm:$0xff]
    %v58 = vld [vmem:[%s2] sm:$0x1]
    %v60 = vlaneseq
    %v61 = vshrl.u32 %v60, 7
    %v62 = vsub.s32 0, %v61
    %v63 = vrot.slane %v58, %v62
    %65 = vmatprep.subr.mxu0 0.0
    %66 = vmatpush1.msra.mxu0 %v57
    %67 = vmatprep.subr.mxu0 0.0
    %68 = vmatpush1.msra.mxu0 %v56
    %69 = vmatprep.subr.mxu0 0.0
    %70 = vmatpush1.msra.mxu0 %v55
    %71 = vmatprep.subr.mxu0 0.0
    %72 = vmatpush1.msra.mxu0 %v54
    %73 = vmatprep.subr.mxu0 0.0
    %74 = vmatpush1.msra.mxu0 %v53
    %75 = vmatprep.subr.mxu0 0.0
    %76 = vmatpush1.msra.mxu0 %v52
    %77 = vmatprep.subr.mxu0 0.0
    %78 = vmatpush1.msra.mxu0 %v51
    %79 = vmatprep.subr.mxu0 0.0
    %80 = vmatpush1.msra.mxu0 %v50
    %81 = vmatprep.subr.mxu0 0.0
    %82 = vmatpush1.msra.mxu0 %v49
    %83 = vmatprep.subr.mxu0 0.0
    %84 = vmatpush1.msra.mxu0 %v48
    %85 = vmatprep.subr.mxu0 0.0
    %86 = vmatpush1.msra.mxu0 %v47
    %87 = vmatprep.subr.mxu0 0.0
    %88 = vmatpush1.msra.mxu0 %v46
    %89 = vmatprep.subr.mxu0 0.0
    %90 = vmatpush1.msra.mxu0 %v45
    %91 = vmatprep.subr.mxu0 0.0
    %92 = vmatpush1.msra.mxu0 %v44
    %93 = vmatprep.subr.mxu0 0.0
    %94 = vmatpush1.msra.mxu0 %v43
    %95 = vmatprep.subr.mxu0 0.0
    %96 = vmatpush1.msra.mxu0 %v42
    %97 = vmatprep.subr.mxu0 0.0
    %98 = vmatpush2.msra.mxu0 0.0
    %99 = vmatprep.subr.mxu0 0.0
    %100 = vmatpush2.msra.mxu0 0.0
    %101 = vmatprep.subr.mxu0 0.0
    %102 = vmatpush2.msra.mxu0 0.0
    %103 = vmatprep.subr.mxu0 0.0
    %104 = vmatpush2.msra.mxu0 0.0
    %105 = vmatprep.subr.mxu0 0.0
    %106 = vmatpush2.msra.mxu0 0.0
    %107 = vmatprep.subr.mxu0 0.0
    %108 = vmatpush2.msra.mxu0 0.0
    %109 = vmatprep.subr.mxu0 0.0
    %110 = vmatpush2.msra.mxu0 0.0
    %111 = vmatprep.subr.mxu0 0.0
    %112 = vmatpush2.msra.mxu0 0.0
    %113 = vmatprep.subr.mxu0 0.0
    %114 = vmatpush2.msra.mxu0 0.0
    %115 = vmatprep.subr.mxu0 0.0
    %116 = vmatpush2.msra.mxu0 0.0
    %117 = vmatprep.subr.mxu0 0.0
    %118 = vmatpush2.msra.mxu0 0.0
    %119 = vmatprep.subr.mxu0 0.0
    %120 = vmatpush2.msra.mxu0 0.0
    %121 = vmatprep.subr.mxu0 0.0
    %122 = vmatpush2.msra.mxu0 0.0
    %123 = vmatprep.subr.mxu0 0.0
    %124 = vmatpush2.msra.mxu0 0.0
    %125 = vmatprep.subr.mxu0 0.0
    %126 = vmatpush2.msra.mxu0 0.0
    %127 = vmatprep.subr.mxu0 0.0
    %128 = vmatpush2.msra.mxu0 0.0
    %129 = vmatprep.mubr.f32.mxu0 0.0
    %130 = vmatmul.mubr.f32.gmra.mxu0 %v41
    %v131 = vpop.f32.mrf.mxu0
    %v132 = vadd.f32 %v63, %v131
    %v133 = vpop.f32.mrf.mxu0
    %134 = vdwg.mxu0
    %135 = vst [vmem:[#allocation7] sm:$0xff] %v132
    // Predicated region
    $region22: #{tpu_custom_call.1} parent=1 // pred_check
      _
    $region23: #{tpu_custom_call.1} parent=1 // pred_check_branch
      %137 = sbr.rel (0) target = $region25
    $region24: #{tpu_custom_call.1} parent=1 // pred_region
      %s139 = ssub.s32 128, 128
      %140 = vsyncadd [#allocation4], %s139
      %s142 = sshll.u32 [#allocation7], 4
      %s143 = int_to_ptr.vmem [resolvable:$true] %s142
      %145 = dma.vmem_to_hbm [thread:$0]  %s143, 128, %s3, [#allocation4]
    $region25: #{tpu_custom_call.1} parent=1 // pred_fallthru
      _
    // Predicated region
    $region26: #{tpu_custom_call.1} parent=1 // pred_check
      _
    $region27: #{tpu_custom_call.1} parent=1 // pred_check_branch
      %147 = sbr.rel (0) target = $region29
    $region28: #{tpu_custom_call.1} parent=1 // pred_region
      %148 = dma.done [#allocation4], 128
    $region29: #{tpu_custom_call.1} parent=1 // pred_fallthru
      _
    %149 = vsyncpa [#allocation3], 1
    %150 = vsyncpa [#allocation6], 1
    %151 = vsyncpa [#allocation4], 1

</llo_original>
